<compile_context>
chip_gen: v7x
topology: tpu7x:2x2x1
jax: 0.10.0
libtpu: 0.0.40
codegen_flags: <defaults>
</compile_context>

<pallas_src>
import functools

import jax
import jax.numpy as jnp
from jax.experimental import pallas as pl
from jax.experimental.pallas import tpu as pltpu

_MIB = 1024 * 1024


def _round_up(x, m):
    return (x + m - 1) // m * m


@functools.lru_cache(maxsize=1)
def _vmem_capacity_bytes():
    """Physical VMEM per TensorCore; used as a chip-generation proxy."""
    try:
        info = pltpu.get_tpu_info()
        return int(getattr(info, "vmem_capacity_bytes", 64 * _MIB))
    except Exception:  # non-TPU backend / interpret mode / older jax
        return 64 * _MIB


def _choose_tiles(rows, lanes, row_cap, lane_cap, want_multi_step):
    """Pick (row_block, lane_block).

    A dim that fits under its cap uses the full dim (exempt from the (8,128)
    rule).  Otherwise the cap (a multiple of 8 / 128) is used and Pallas masks
    the partial edge block.  On 2-TensorCore chips, shrink until the grid has
    >= 2 steps so both cores get work.
    """
    row_block = rows if rows <= row_cap else row_cap
    lane_block = lanes if lanes <= lane_cap else lane_cap

    if want_multi_step:
        def n_steps(rb, lb):
            return pl.cdiv(rows, rb) * pl.cdiv(lanes, lb)

        while n_steps(row_block, lane_block) < 2 and lane_block > 128:
            lane_block = max(128, _round_up(lane_block // 2, 128))
        while n_steps(row_block, lane_block) < 2 and row_block > 8:
            row_block = max(8, _round_up(row_block // 2, 8))
    return row_block, lane_block


def _aconc_kernel(x_ref, p_ref, o_ref):
    x = x_ref[...].astype(jnp.float32)          # (row_block, lane_block)
    p = p_ref[...].astype(jnp.float32)          # (row_block, 3) packed coeffs
    a = p[:, 0:1]                               # 0.5*(p1-p2)
    b = p[:, 1:2]                               # 0.5*(p1+p2)
    c = p[:, 2:3]                               # 0.5*beta*(p1-p2)
    t = jnp.tanh(c * x)                         # EUP slot
    o_ref[...] = (x * (a * t + b)).astype(o_ref.dtype)


@jax.jit
def aconc_forward(x_nchw, p1, p2, beta):
    """x_nchw: (N, C, H, W); p1/p2/beta: (1, C, 1, 1). Returns (N, C, H, W)."""
    N, C, H, W = x_nchw.shape
    R, S = N * C, H * W

    vmem_cap = _vmem_capacity_bytes()
    if vmem_cap >= 96 * _MIB:       # v5e / v6e: 128 MiB VMEM, single TC
        row_cap, lane_cap = 256, 8192           # up to 8 MiB f32 blocks
        want_multi_step = False
    else:                            # v7x-class: 64 MiB VMEM, 2 TCs / chip
        row_cap, lane_cap = 256, 4096           # up to 4 MiB f32 blocks
        want_multi_step = True

    row_block, lane_block = _choose_tiles(R, S, row_cap, lane_cap,
                                          want_multi_step)
    grid = (pl.cdiv(R, row_block), pl.cdiv(S, lane_block))

    # 2D layout: rows = N*C (sublanes), lanes = H*W (lane-dense). Free reshape.
    x2 = x_nchw.reshape(R, S)

    # Per-channel coefficients for the tanh form (exact rewrite of sigmoid):
    #   out = x * (a * tanh(c * x) + b)
    p1c = p1.reshape(C).astype(jnp.float32)
    p2c = p2.reshape(C).astype(jnp.float32)
    bc = beta.reshape(C).astype(jnp.float32)
    d = p1c - p2c
    coeffs = jnp.stack([0.5 * d, 0.5 * (p1c + p2c), 0.5 * bc * d], axis=1)
    coeffs = jnp.tile(coeffs, (N, 1))           # (R, 3); row r -> channel r % C

    # VMEM budget: double-buffered input + output blocks + packed coeffs.
    itemsize = jnp.dtype(x_nchw.dtype).itemsize
    block_bytes = row_block * lane_block * itemsize
    coeff_block_bytes = row_block * 128 * 4     # last dim pads to 128 lanes
    footprint = 2 * (2 * block_bytes + coeff_block_bytes)
    vmem_limit = max(32 * _MIB, footprint + 8 * _MIB)
    vmem_limit = min(vmem_limit, (vmem_cap * 3) // 4)

    x_spec = pl.BlockSpec((row_block, lane_block), lambda i, j: (i, j))
    p_spec = pl.BlockSpec((row_block, 3), lambda i, j: (i, 0))
    o_spec = pl.BlockSpec((row_block, lane_block), lambda i, j: (i, j))

    out = pl.pallas_call(
        _aconc_kernel,
        out_shape=jax.ShapeDtypeStruct((R, S), x_nchw.dtype),
        grid_spec=pltpu.PrefetchScalarGridSpec(
            num_scalar_prefetch=0,
            grid=grid,
            in_specs=[x_spec, p_spec],
            out_specs=o_spec,
        ),
        compiler_params=pltpu.CompilerParams(
            dimension_semantics=("parallel", "parallel"),
            vmem_limit_bytes=int(vmem_limit),
        ),
    )(x2, coeffs)

    return out.reshape(N, C, H, W)


def aconc_reference(x, p1, p2, beta):
    dpx = (p1 - p2) * x
    return dpx * jax.nn.sigmoid(beta * dpx) + p2 * x


if __name__ == "__main__":
    key = jax.random.PRNGKey(0)
    k_x, k_p1, k_p2, k_beta = jax.random.split(key, 4)

    # Primary small test, matching nn.Parameter(torch.randn(1, c1, 1, 1)) init.
    N, C, H, W = 2, 4, 16, 16
    x = jax.random.normal(k_x, (N, C, H, W), dtype=jnp.float32)
    p1 = jax.random.normal(k_p1, (1, C, 1, 1), dtype=jnp.float32)
    p2 = jax.random.normal(k_p2, (1, C, 1, 1), dtype=jnp.float32)
    beta = jax.random.normal(k_beta, (1, C, 1, 1), dtype=jnp.float32)

    out = jax.block_until_ready(aconc_forward(x, p1, p2, beta))
    ref = aconc_reference(x, p1, p2, beta)
    assert out.shape == (N, C, H, W)
    assert jnp.allclose(out, ref, atol=1e-4, rtol=1e-4), "mismatch vs reference"

    # Non-(8,128)-aligned shape: exercises full-dim (divisibility-exempt) blocks.
    x_b = jax.random.normal(k_x, (2, 3, 7, 9), dtype=jnp.float32)
    p1_b = jax.random.normal(k_p1, (1, 3, 1, 1), dtype=jnp.float32)
    p2_b = jax.random.normal(k_p2, (1, 3, 1, 1), dtype=jnp.float32)
    beta_b = jax.random.normal(k_beta, (1, 3, 1, 1), dtype=jnp.float32)
    out_b = jax.block_until_ready(aconc_forward(x_b, p1_b, p2_b, beta_b))
    ref_b = aconc_reference(x_b, p1_b, p2_b, beta_b)
    assert jnp.allclose(out_b, ref_b, atol=1e-4, rtol=1e-4), "mismatch (odd shape)"

    print("KERNEL_OK")
</pallas_src>

<mosaic_0001>
module attributes {stable_mosaic.version = 11 : i64} {
  func.func @_aconc_kernel(%arg0: i32, %arg1: i32, %arg2: memref<8x128xf32, #tpu.memory_space<vmem>>, %arg3: memref<8x3xf32, #tpu.memory_space<vmem>>, %arg4: memref<8x128xf32, #tpu.memory_space<vmem>>) attributes {dimension_semantics = [#tpu.dimension_semantics<parallel>, #tpu.dimension_semantics<parallel>], iteration_bounds = array<i64: 1, 2>, scalar_prefetch = 0 : i64, scratch_operands = 0 : i64, tpu.core_type = #tpu.core_type<tc>, window_params = [{transform_indices = @transform_0, window_bounds = array<i64: 8, 128>}, {transform_indices = @transform_1, window_bounds = array<i64: 8, 3>}, {transform_indices = @transform_2, window_bounds = array<i64: 8, 128>}]} {
    %c0 = arith.constant 0 : index
    %c0_0 = arith.constant 0 : index
    %0 = vector.load %arg2[%c0, %c0_0] : memref<8x128xf32, #tpu.memory_space<vmem>>, vector<8x128xf32>
    %c0_1 = arith.constant 0 : index
    %c0_2 = arith.constant 0 : index
    %1 = vector.load %arg3[%c0_1, %c0_2] : memref<8x3xf32, #tpu.memory_space<vmem>>, vector<8x3xf32>
    %2 = vector.extract_strided_slice %1 {offsets = [0, 0], sizes = [8, 1], strides = [1, 1]} : vector<8x3xf32> to vector<8x1xf32>
    %3 = vector.extract_strided_slice %1 {offsets = [0, 1], sizes = [8, 1], strides = [1, 1]} : vector<8x3xf32> to vector<8x1xf32>
    %4 = vector.extract_strided_slice %1 {offsets = [0, 2], sizes = [8, 1], strides = [1, 1]} : vector<8x3xf32> to vector<8x1xf32>
    %5 = vector.broadcast %4 : vector<8x1xf32> to vector<8x128xf32>
    %6 = arith.mulf %5, %0 : vector<8x128xf32>
    %7 = math.tanh %6 : vector<8x128xf32>
    %8 = vector.broadcast %2 : vector<8x1xf32> to vector<8x128xf32>
    %9 = arith.mulf %8, %7 : vector<8x128xf32>
    %10 = vector.broadcast %3 : vector<8x1xf32> to vector<8x128xf32>
    %11 = arith.addf %9, %10 : vector<8x128xf32>
    %12 = arith.mulf %0, %11 : vector<8x128xf32>
    %c0_3 = arith.constant 0 : index
    %c0_4 = arith.constant 0 : index
    %13 = vector.load %arg4[%c0_3, %c0_4] : memref<8x128xf32, #tpu.memory_space<vmem>>, vector<8x128xf32>
    tpu.vector_store %arg4[%c0_3, %c0_4], %12 {strides = array<i32>} : memref<8x128xf32, #tpu.memory_space<vmem>>, vector<8x128xf32>,
    return
  }
  func.func @transform_0(%arg0: i32, %arg1: i32) -> (i32, i32) {
    %c0_i32 = arith.constant 0 : i32
    return %arg0, %arg1 : i32, i32
  }
  func.func @transform_1(%arg0: i32, %arg1: i32) -> (i32, i32) {
    %c0_i32 = arith.constant 0 : i32
    %c0_i32_0 = arith.constant 0 : i32
    return %arg0, %c0_i32 : i32, i32
  }
  func.func @transform_2(%arg0: i32, %arg1: i32) -> (i32, i32) {
    %c0_i32 = arith.constant 0 : i32
    return %arg0, %arg1 : i32, i32
  }
}

</mosaic_0001>

<llo_original>
// kernel: aconc_forward.1
$region0: #{aconc_forward.1}
  #allocation0 [shape = 'u32[]', space=smem, size = 0x4, offset = 0x4, fixed_abs, tag = 'smem constant byte address 0x4 - core index']
  #allocation1 [shape = 'u32[144,128]{1,0:T(1,128)}', space=vmem, size = 0x12000, scoped, tag = 'internal scratch']
  %s0 = inlined_call_operand.vmem [shape: f32[8,256], index: 0, kind: input, shape index: {}]
  %s1 = inlined_call_operand.vmem [shape: f32[8,3], index: 1, kind: input, shape index: {}]
  %s2 = inlined_call_operand.vmem [shape: f32[8,256], index: 2, kind: output, shape index: {}]
  %s3 = sld [smem:[#allocation0]]
  $region41: #{aconc_forward.1} parent=0
    _
  %s5 = ssub.s32 1, %s3
  %s6 = scalar_select 0, %s5, %s3
  loop: start=0, step=1, limit=4
  $region2: #{aconc_forward.1} parent=0 // loop_pre_header
    _
  $region3: #{aconc_forward.1} parent=0 // loop_header
    %s8 = sphi 0, %s12
    %p9 = scmp.ge.s32.totalorder %s8, 4
    %s15 = sphi 0, %s27
    %s16 = sphi 0, %s23
    %s17 = sphi 0, %s15
    %s18 = sphi 0, %s16
    %s19 = sphi 0, %s17
    %s20 = sphi 0, %s18
    %s32 = sphi 0, %s34
    %s35 = sphi 0, %s32
    %s36 = sphi 0, %s35
    %s52 = sphi 0, %s36
    %s58 = sphi 0, %s60
    %s61 = sphi 0, %s58
    %s62 = sphi 0, %s61
    %s78 = sphi 0, %s62
    %s86 = sphi 0, %s88
    %s89 = sphi 0, %s86
    %s90 = sphi 0, %s89
    %s106 = sphi 0, %s90
  $region4: #{aconc_forward.1} parent=0 // loop_header_branch
    %11 = sbr.rel (%p9) target = $region8
  $region5: #{aconc_forward.1} parent=0 // loop_body
    %s13 = ssub.s32 %s8, 1
    %s14 = ssub.s32 %s8, 2
    %s21 = sadd.s32 1, %s16
    %p22 = scmp.ge.s32.totalorder %s21, 2
    %s23 = scalar_select %p22, 0, %s21
    %s24 = sadd.s32 1, %s15
    %s25 = scalar_select %p22, %s24, %s15
    %p26 = scmp.ge.s32.totalorder %s25, 1
    %s27 = scalar_select %p26, 0, %s25
    %s28 = ssub.s32 %s15, %s27
    %s29 = ssub.s32 %s16, %s23
    %s30 = sor.u32 %s28, %s29
    %p31 = scmp.eq.s32.totalorder %s30, 0
    %s33 = sadd.s32 %s32, 1
    %s34 = scalar_select %p31, %s32, %s33
    %p37 = pneg %p31
    %p38 = scmp.eq.s32.totalorder %s8, 1
    %p39 = por %p37, %p38
    %p40 = scmp.ne.s32.totalorder %s32, %s35
    %p41 = scmp.eq.s32.totalorder %s8, 0
    %p42 = por %p40, %p41
    %p43 = scmp.ne.s32.totalorder %s32, %s35
    %p44 = scmp.eq.s32.totalorder %s13, 1
    %p45 = por %p43, %p44
    %p46 = scmp.ne.s32.totalorder %s35, %s36
    %p47 = scmp.eq.s32.totalorder %s13, 0
    %p48 = por %p46, %p47
    %p49 = scmp.ne.s32.totalorder %s35, %s36
    %p50 = scmp.eq.s32.totalorder %s14, 1
    %p51 = por %p49, %p50
    %p53 = scmp.ne.s32.totalorder %s36, %s52
    %p54 = scmp.eq.s32.totalorder %s14, 0
    %p55 = por %p53, %p54
    %s56 = ssub.s32 %s15, %s27
    %p57 = scmp.eq.s32.totalorder %s56, 0
    %s59 = sadd.s32 %s58, 1
    %s60 = scalar_select %p57, %s58, %s59
    %p63 = pneg %p57
    %p64 = scmp.eq.s32.totalorder %s8, 1
    %p65 = por %p63, %p64
    %p66 = scmp.ne.s32.totalorder %s58, %s61
    %p67 = scmp.eq.s32.totalorder %s8, 0
    %p68 = por %p66, %p67
    %p69 = scmp.ne.s32.totalorder %s58, %s61
    %p70 = scmp.eq.s32.totalorder %s13, 1
    %p71 = por %p69, %p70
    %p72 = scmp.ne.s32.totalorder %s61, %s62
    %p73 = scmp.eq.s32.totalorder %s13, 0
    %p74 = por %p72, %p73
    %p75 = scmp.ne.s32.totalorder %s61, %s62
    %p76 = scmp.eq.s32.totalorder %s14, 1
    %p77 = por %p75, %p76
    %p79 = scmp.ne.s32.totalorder %s62, %s78
    %p80 = scmp.eq.s32.totalorder %s14, 0
    %p81 = por %p79, %p80
    %s82 = ssub.s32 %s15, %s27
    %s83 = ssub.s32 %s16, %s23
    %s84 = sor.u32 %s82, %s83
    %p85 = scmp.eq.s32.totalorder %s84, 0
    %s87 = sadd.s32 %s86, 1
    %s88 = scalar_select %p85, %s86, %s87
    %p91 = pneg %p85
    %p92 = scmp.eq.s32.totalorder %s8, 1
    %p93 = por %p91, %p92
    %p94 = scmp.ne.s32.totalorder %s86, %s89
    %p95 = scmp.eq.s32.totalorder %s8, 0
    %p96 = por %p94, %p95
    %p97 = scmp.ne.s32.totalorder %s86, %s89
    %p98 = scmp.eq.s32.totalorder %s13, 1
    %p99 = por %p97, %p98
    %p100 = scmp.ne.s32.totalorder %s89, %s90
    %p101 = scmp.eq.s32.totalorder %s13, 0
    %p102 = por %p100, %p101
    %p103 = scmp.ne.s32.totalorder %s89, %s90
    %p104 = scmp.eq.s32.totalorder %s14, 1
    %p105 = por %p103, %p104
    %p107 = scmp.ne.s32.totalorder %s90, %s106
    %p108 = scmp.eq.s32.totalorder %s14, 0
    %p109 = por %p107, %p108
    %p110 = scmp.le.s32.totalorder 1, %s8
    %p111 = scmp.lt.s32.totalorder %s8, 3
    %p112 = pnand %p110, %p111
    %p113 = pneg %p112
    // Predicated region
    $region9: #{aconc_forward.1} parent=5 // pred_check
      _
    $region10: #{aconc_forward.1} parent=5 // pred_check_branch
      %115 = sbr.rel (%p112) target = $region12
    $region11: #{aconc_forward.1} parent=5 // pred_region
      %s116 = ssub.s32 %s8, 1
      // Predicated region
      $region13: #{aconc_forward.1} parent=11 // pred_check
        %p117 = pneg %p74
      $region14: #{aconc_forward.1} parent=11 // pred_check_branch
        %119 = sbr.rel (%p117) target = $region16
      $region15: #{aconc_forward.1} parent=11 // pred_region
        %p120 = scmp.lt.s32.totalorder %s17, 0
        %s121 = scalar_select %p120, %s17, 0
        %s122 = smul.addr %s121, 8
        %s123 = scalar_lea.vmem %s1, %s122
      $region16: #{aconc_forward.1} parent=11 // pred_fallthru
        _
    $region12: #{aconc_forward.1} parent=5 // pred_fallthru
      _
    %p124 = scmp.lt.s32.totalorder %s8, 2
    // Predicated region
    $region17: #{aconc_forward.1} parent=5 // pred_check
      %p125 = pneg %p124
    $region18: #{aconc_forward.1} parent=5 // pred_check_branch
      %127 = sbr.rel (%p125) target = $region20
    $region19: #{aconc_forward.1} parent=5 // pred_region
      // Predicated region
      $region21: #{aconc_forward.1} parent=19 // pred_check
        %p128 = pneg %p42
      $region22: #{aconc_forward.1} parent=19 // pred_check_branch
        %130 = sbr.rel (%p128) target = $region24
      $region23: #{aconc_forward.1} parent=19 // pred_region
        %p131 = scmp.lt.s32.totalorder %s15, 0
        %s132 = scalar_select %p131, %s15, 0
        %p133 = scmp.lt.s32.totalorder %s16, 1
        %s134 = scalar_select %p133, %s16, 1
        %s135 = smul.addr %s132, 2
        %s136 = sadd.s32 %s134, %s135
        %s137 = smul.addr %s136, 8
        %s138 = scalar_lea.vmem %s0, %s137
      $region24: #{aconc_forward.1} parent=19 // pred_fallthru
        _
    $region20: #{aconc_forward.1} parent=5 // pred_fallthru
      _
    %p139 = scmp.le.s32.totalorder 1, %s8
    %p140 = scmp.lt.s32.totalorder %s8, 3
    %p141 = pnand %p139, %p140
    %p142 = pneg %p141
    // Predicated region
    $region25: #{aconc_forward.1} parent=5 // pred_check
      _
    $region26: #{aconc_forward.1} parent=5 // pred_check_branch
      %144 = sbr.rel (%p141) target = $region28
    $region27: #{aconc_forward.1} parent=5 // pred_region
      %s145 = ssub.s32 %s8, 1
      %p146 = scmp.lt.s32.totalorder %s17, 0
      %s147 = scalar_select %p146, %s17, 0
      %p148 = scmp.lt.s32.totalorder %s18, 1
      %s149 = scalar_select %p148, %s18, 1
      %s150 = smul.addr %s147, 2
      %s151 = sadd.s32 %s149, %s150
      %s152 = smul.addr %s151, 8
      %s153 = scalar_lea.vmem %s0, %s152
      %p154 = pneg %p48
      %p155 = pneg %p45
      %p156 = scmp.lt.s32.totalorder %s17, 0
      %s157 = scalar_select %p156, %s17, 0
      %s158 = smul.addr %s157, 8
      %s159 = scalar_lea.vmem %s1, %s158
      %p160 = pneg %p74
      %p161 = pneg %p71
      %p162 = pneg %p102
      %p163 = pneg %p99
      %p164 = scmp.lt.s32.totalorder %s17, 0
      %s165 = scalar_select %p164, %s17, 0
      %p166 = scmp.lt.s32.totalorder %s18, 1
      %s167 = scalar_select %p166, %s18, 1
      %s168 = smul.addr %s165, 2
      %s169 = sadd.s32 %s167, %s168
      %s170 = smul.addr %s169, 8
      %s171 = scalar_lea.vmem %s2, %s170
      %p172 = scmp.lt.s32.totalorder %s17, 0
      %s173 = scalar_select %p172, %s17, 0
      %p174 = scmp.lt.s32.totalorder %s18, 1
      %s175 = scalar_select %p174, %s18, 1
      %s176 = smul.addr %s173, 2
      %s177 = sadd.s32 %s175, %s176
      %s178 = smul.addr %s177, 8
      %s179 = scalar_lea.vmem %s0, %s178
      %p180 = scmp.lt.s32.totalorder %s17, 0
      %s181 = scalar_select %p180, %s17, 0
      %s182 = smul.addr %s181, 8
      %s183 = scalar_lea.vmem %s1, %s182
      %p184 = scmp.lt.s32.totalorder %s17, 0
      %s185 = scalar_select %p184, %s17, 0
      %p186 = scmp.lt.s32.totalorder %s18, 1
      %s187 = scalar_select %p186, %s18, 1
      %s188 = smul.addr %s185, 2
      %s189 = sadd.s32 %s187, %s188
      %s190 = smul.addr %s189, 8
      %s191 = scalar_lea.vmem %s2, %s190
      %v192 = vld [vmem:[%s179] sm:$0xff]
      %v193 = vld [vmem:[%s183] sm:$0xff]
      %195 = vset.pattern.permute.xlu0 2
      %196 = vperm.xlu0 %195, %v193
      %v197 = vpop.permute.xlu0 %196
      %v199 = vmul.f32 %v197, %v192
      %v200 = vtanh.pop %v199
      %201 = vset.pattern.permute.xlu0 0
      %202 = vperm.xlu0 %201, %v193
      %v203 = vpop.permute.xlu0 %202
      %v205 = vmul.f32 %v203, %v200
      %206 = vset.pattern.permute.xlu0 1
      %207 = vperm.xlu0 %206, %v193
      %v208 = vpop.permute.xlu0 %207
      %v210 = vadd.f32 %v205, %v208
      %v211 = vmul.f32 %v192, %v210
      %212 = vst [vmem:[%s191] sm:$0xff] %v211
      %p213 = scmp.lt.s32.totalorder %s17, 0
      %s214 = scalar_select %p213, %s17, 0
      %p215 = scmp.lt.s32.totalorder %s18, 1
      %s216 = scalar_select %p215, %s18, 1
      %s217 = smul.addr %s214, 2
      %s218 = sadd.s32 %s216, %s217
      %s219 = smul.addr %s218, 8
      %s220 = scalar_lea.vmem %s2, %s219
      // Predicated region
      $region29: #{aconc_forward.1} parent=27 // pred_check
        %p221 = pneg %p99
      $region30: #{aconc_forward.1} parent=27 // pred_check_branch
        %223 = sbr.rel (%p221) target = $region32
      $region31: #{aconc_forward.1} parent=27 // pred_region
        _
      $region32: #{aconc_forward.1} parent=27 // pred_fallthru
        _
    $region28: #{aconc_forward.1} parent=5 // pred_fallthru
      _
    %p224 = scmp.le.s32.totalorder 2, %s8
    // Predicated region
    $region33: #{aconc_forward.1} parent=5 // pred_check
      %p225 = pneg %p224
    $region34: #{aconc_forward.1} parent=5 // pred_check_branch
      %227 = sbr.rel (%p225) target = $region36
    $region35: #{aconc_forward.1} parent=5 // pred_region
      %s228 = ssub.s32 %s8, 2
      // Predicated region
      $region37: #{aconc_forward.1} parent=35 // pred_check
        %p229 = pneg %p105
      $region38: #{aconc_forward.1} parent=35 // pred_check_branch
        %231 = sbr.rel (%p229) target = $region40
      $region39: #{aconc_forward.1} parent=35 // pred_region
        %p232 = scmp.lt.s32.totalorder %s19, 0
        %s233 = scalar_select %p232, %s19, 0
        %p234 = scmp.lt.s32.totalorder %s20, 1
        %s235 = scalar_select %p234, %s20, 1
        %s236 = smul.addr %s233, 2
        %s237 = sadd.s32 %s235, %s236
        %s238 = smul.addr %s237, 8
        %s239 = scalar_lea.vmem %s2, %s238
      $region40: #{aconc_forward.1} parent=35 // pred_fallthru
        _
    $region36: #{aconc_forward.1} parent=5 // pred_fallthru
      _
  $region6: #{aconc_forward.1} parent=0 // loop_footer
    %s12 = sadd.s32 1, %s8
  $region7: #{aconc_forward.1} parent=0 // loop_footer_branch
    %7 = sbr.rel target = $region3
  $region8: #{aconc_forward.1} parent=0 // loop_exit
    _

</llo_original>
